<compile_context>
chip_gen: v5e
topology: v5e:2x2
jax: 0.10.0
libtpu: 0.0.40
codegen_flags: <defaults>
</compile_context>

<pallas_src>
import functools

import jax
import jax.numpy as jnp
from jax.experimental import pallas as pl
from jax.experimental.pallas import tpu as pltpu


def _round_up(v, m):
    return ((v + m - 1) // m) * m


# ---------------------------------------------------------------------------
# Dropout helper (counter-based hash PRNG, sequential murmur3 mixing).
# ---------------------------------------------------------------------------
def _fmix32(h):
    h = h ^ (h >> 16)
    h = h * jnp.uint32(0x85EBCA6B)
    h = h ^ (h >> 13)
    h = h * jnp.uint32(0xC2B2AE35)
    h = h ^ (h >> 16)
    return h


def _apply_dropout(y, i, j, seed_val, rate):
    """Inverted dropout on a (tm, tn) f32 tile, keyed on global coordinates."""
    tm, tn = y.shape
    row = (jax.lax.broadcasted_iota(jnp.int32, (tm, tn), 0)
           + i * tm).astype(jnp.uint32)
    col = (jax.lax.broadcasted_iota(jnp.int32, (tm, tn), 1)
           + j * tn).astype(jnp.uint32)
    seed_u = seed_val.astype(jnp.uint32)

    # Sequential mixing: h = fmix(fmix(seed ^ row') ^ col') -> no structural
    # correlation between (row, col) pairs (unlike a single xor-of-products).
    h = _fmix32(seed_u ^ (row * jnp.uint32(0x9E3779B1)))
    h = _fmix32(h ^ (col * jnp.uint32(0x85EBCA77)))

    # TODO(synk): on real hardware pltpu.prng_seed + pltpu.prng_random_bits
    # would free these VALU slots; the hash is kept so the same code also runs
    # under the CPU interpret fallback.
    thresh = min(int(round(rate * 2.0 ** 32)), (1 << 32) - 1)
    keep = h >= jnp.uint32(thresh)
    scale = jnp.float32(1.0 / (1.0 - rate))
    return jnp.where(keep, y * scale, jnp.float32(0.0))


# ---------------------------------------------------------------------------
# Kernels.
# ---------------------------------------------------------------------------
def _mlp_kernel_single(seed_ref, x_ref, w_ref, b_ref, o_ref, *,
                       dropout_rate, training):
    """Single-pass path: full K slab resident, no accumulator, no pl.when."""
    i = pl.program_id(0)
    j = pl.program_id(1)
    seed_val = seed_ref[0]

    x = x_ref[...].astype(jnp.bfloat16)          # f32 tile -> bf16 in-kernel
    y = jnp.dot(x, w_ref[...], preferred_element_type=jnp.float32)
    y = y + b_ref[...]                            # (tm, tn) + (1, tn)

    # TODO(synk): act_func is an arbitrary callable in the PyTorch module;
    # ReLU is hard-coded here.
    y = jnp.maximum(y, 0.0)

    if training and dropout_rate > 0.0:
        y = _apply_dropout(y, i, j, seed_val, dropout_rate)

    o_ref[...] = y.astype(o_ref.dtype)


def _mlp_kernel_kgrid(seed_ref, x_ref, w_ref, b_ref, o_ref, acc_ref, *,
                      dropout_rate, training):
    """K-reduction path: f32 VMEM accumulator, init/finalize via pl.when."""
    # NOTE: all program_id / num_programs / scalar reads are hoisted to the
    # top level (outside pl.when) — required for the CPU interpret fallback.
    i = pl.program_id(0)
    j = pl.program_id(1)
    k = pl.program_id(2)
    nk = pl.num_programs(2)
    seed_val = seed_ref[0]

    @pl.when(k == 0)
    def _init():
        acc_ref[...] = jnp.zeros_like(acc_ref)

    acc_ref[...] += jnp.dot(x_ref[...].astype(jnp.bfloat16), w_ref[...],
                            preferred_element_type=jnp.float32)

    @pl.when(k == nk - 1)
    def _finalize():
        y = acc_ref[...] + b_ref[...]
        # TODO(synk): act_func hard-coded to ReLU (see module spec).
        y = jnp.maximum(y, 0.0)
        if training and dropout_rate > 0.0:
            y = _apply_dropout(y, i, j, seed_val, dropout_rate)
        o_ref[...] = y.astype(o_ref.dtype)


# ---------------------------------------------------------------------------
# One-time parameter preparation (weights are static: pad/cast once).
# ---------------------------------------------------------------------------
def prepare_linear_params(w, b, *, tn=256, tk=512, single_pass_k_limit=2048):
    """w: torch-layout (N, K) f32; b: (N,) f32.

    Returns (w_padded_bf16 (Kp, Np), bias_f32 (1, Np), meta dict)."""
    N, K = w.shape
    assert b.shape == (N,)

    tn_eff = min(tn, _round_up(N, 128))
    Np = _round_up(N, tn_eff)

    Kp0 = _round_up(K, 128)
    single_pass = Kp0 <= single_pass_k_limit
    if single_pass:
        tk_eff = Kp0
        Kp = Kp0
    else:
        tk_eff = min(tk, Kp0)
        Kp = _round_up(K, tk_eff)

    w_t = jnp.transpose(w)                                        # (K, N)
    w_p = jnp.pad(w_t, ((0, Kp - K), (0, Np - N))).astype(jnp.bfloat16)
    b_p = jnp.pad(b, (0, Np - N)).astype(jnp.float32).reshape(1, Np)

    meta = dict(K=K, N=N, Kp=Kp, Np=Np, tn=tn_eff, tk=tk_eff,
                single_pass=single_pass)
    return w_p, b_p, meta


# ---------------------------------------------------------------------------
# Forward pass wrapper.
# ---------------------------------------------------------------------------
def mlp_block(x, params, seed, *, dropout_rate, training, tm=256,
              out_dtype=jnp.float32):
    """x: (M, K) f32; params: output of prepare_linear_params; seed: (1,) i32.

    out_dtype=jnp.bfloat16 halves output writeback if the consumer allows it;
    default f32 keeps the PyTorch nn.Linear output dtype."""
    w_p, b_p, meta = params
    M, K = x.shape
    assert K == meta["K"]
    N, Kp, Np = meta["N"], meta["Kp"], meta["Np"]
    tn, tk, single_pass = meta["tn"], meta["tk"], meta["single_pass"]

    # --- tile choice on the M axis ---
    tm_eff = min(tm, _round_up(M, 8))
    Mp = _round_up(M, tm_eff)
    # Keep >=2 blocks on a parallel axis so v7x megacore can shard the grid.
    if (Mp // tm_eff) == 1 and (Np // tn) == 1 and tm_eff >= 16 and tm_eff % 16 == 0:
        tm_eff //= 2
    grid_m = Mp // tm_eff
    grid_n = Np // tn

    # Pad x only if needed (no-op when already aligned); keep f32 — the bf16
    # cast happens inside the kernel to avoid an extra HBM pass.
    xp = x if (Mp == M and Kp == K) else jnp.pad(x, ((0, Mp - M), (0, Kp - K)))

    # --- VMEM budget (double-buffered operands + output + accumulator) ---
    out_bytes = jnp.dtype(out_dtype).itemsize
    footprint = 2 * (tm_eff * tk * 4          # x tile (f32)
                     + tk * tn * 2            # W tile (bf16)
                     + tn * 4                 # bias tile
                     + tm_eff * tn * out_bytes)
    if not single_pass:
        footprint += tm_eff * tn * 4          # f32 accumulator scratch
    vmem_limit = int(min(max(2 * footprint + (4 << 20), 32 << 20), 48 << 20))

    # --- cost estimate (includes operand re-streaming) ---
    flops = 2 * Mp * Np * Kp
    bytes_accessed = (Mp * Kp * 4) * grid_n + (Kp * Np * 2) * grid_m \
        + Np * 4 + Mp * Np * out_bytes

    kernel_kwargs = dict(dropout_rate=float(dropout_rate),
                         training=bool(training))
    if single_pass:
        kernel = functools.partial(_mlp_kernel_single, **kernel_kwargs)
        grid = (grid_m, grid_n)
        in_specs = [
            pl.BlockSpec((tm_eff, Kp), lambda i, j, s: (i, 0)),   # x
            pl.BlockSpec((Kp, tn), lambda i, j, s: (0, j)),       # W^T
            pl.BlockSpec((1, tn), lambda i, j, s: (0, j)),        # bias
        ]
        out_specs = pl.BlockSpec((tm_eff, tn), lambda i, j, s: (i, j))
        scratch_shapes = []
        dims = ("parallel", "parallel")
    else:
        kernel = functools.partial(_mlp_kernel_kgrid, **kernel_kwargs)
        grid = (grid_m, grid_n, Kp // tk)
        in_specs = [
            pl.BlockSpec((tm_eff, tk), lambda i, j, k, s: (i, k)),  # x
            pl.BlockSpec((tk, tn), lambda i, j, k, s: (k, j)),      # W^T
            pl.BlockSpec((1, tn), lambda i, j, k, s: (0, j)),       # bias
        ]
        out_specs = pl.BlockSpec((tm_eff, tn), lambda i, j, k, s: (i, j))
        scratch_shapes = [pltpu.VMEM((tm_eff, tn), jnp.float32)]
        dims = ("parallel", "parallel", "arbitrary")

    out = pl.pallas_call(
        kernel,
        out_shape=jax.ShapeDtypeStruct((Mp, Np), out_dtype),
        grid_spec=pltpu.PrefetchScalarGridSpec(
            num_scalar_prefetch=1,                       # seed -> SMEM
            grid=grid,
            in_specs=in_specs,
            out_specs=out_specs,
            scratch_shapes=scratch_shapes,
        ),
        compiler_params=pltpu.CompilerParams(
            dimension_semantics=dims,
            vmem_limit_bytes=vmem_limit),
        cost_estimate=pl.CostEstimate(flops=flops, transcendentals=0,
                                      bytes_accessed=bytes_accessed),
    )(seed, xp, w_p, b_p)

    return out[:M, :N]


# ---------------------------------------------------------------------------
# Demo / self-test.
# ---------------------------------------------------------------------------
if __name__ == "__main__":
    # Shapes consistent with the module: batch=256, in=512, out=256, p=0.1.
    batch, input_size, output_size = 256, 512, 256
    dropout_rate = 0.1

    key = jax.random.PRNGKey(0)
    kx, kw, kb = jax.random.split(key, 3)

    x = jax.random.normal(kx, (batch, input_size), dtype=jnp.float32)
    # torch.nn.Linear stores weight as (out, in).
    w = jax.random.normal(kw, (output_size, input_size),
                          dtype=jnp.float32) / jnp.sqrt(float(input_size))
    b = jax.random.normal(kb, (output_size,), dtype=jnp.float32) * 0.01
    seed = jnp.array([1234], dtype=jnp.int32)

    # Pad/cast the static weights once, outside the per-call path.
    params = prepare_linear_params(w, b)

    # ---- eval mode (single-pass path; dropout = identity) ----
    out_eval = jax.block_until_ready(
        mlp_block(x, params, seed, dropout_rate=dropout_rate, training=False))
    xb = x.astype(jnp.bfloat16).astype(jnp.float32)
    wb = jnp.transpose(w).astype(jnp.bfloat16).astype(jnp.float32)
    ref = jnp.maximum(xb @ wb + b, 0.0)
    assert out_eval.shape == (batch, output_size)
    assert jnp.allclose(out_eval, ref, atol=2e-2, rtol=2e-2), "eval mismatch"

    # ---- training mode (dropout active, deterministic seed) ----
    out_train = jax.block_until_ready(
        mlp_block(x, params, seed, dropout_rate=dropout_rate, training=True))
    assert out_train.shape == (batch, output_size)
    scale = 1.0 / (1.0 - dropout_rate)
    scaled = out_eval * scale
    ok = (out_train == 0.0) | (jnp.abs(out_train - scaled)
                               <= 1e-3 + 1e-2 * jnp.abs(scaled))
    assert bool(jnp.all(ok)), "dropout values inconsistent"
    pos = out_eval > 1e-6
    dropped = pos & (out_train == 0.0)
    frac = float(jnp.sum(dropped)) / max(float(jnp.sum(pos)), 1.0)
    assert 0.01 < frac < 0.3, f"unexpected drop fraction {frac}"

    # ---- also exercise the K-reduction (accumulator) path ----
    M2, K2, N2 = 64, 512, 128
    x2 = jax.random.normal(jax.random.PRNGKey(1), (M2, K2), dtype=jnp.float32)
    w2 = jax.random.normal(jax.random.PRNGKey(2), (N2, K2),
                           dtype=jnp.float32) / jnp.sqrt(float(K2))
    b2 = jax.random.normal(jax.random.PRNGKey(3), (N2,), dtype=jnp.float32) * 0.01
    params2 = prepare_linear_params(w2, b2, tk=256, single_pass_k_limit=128)
    assert not params2[2]["single_pass"]

    out2_eval = jax.block_until_ready(
        mlp_block(x2, params2, seed, dropout_rate=dropout_rate, training=False))
    ref2 = jnp.maximum(
        x2.astype(jnp.bfloat16).astype(jnp.float32)
        @ jnp.transpose(w2).astype(jnp.bfloat16).astype(jnp.float32) + b2, 0.0)
    assert jnp.allclose(out2_eval, ref2, atol=2e-2, rtol=2e-2), "k-grid eval mismatch"

    out2_train = jax.block_until_ready(
        mlp_block(x2, params2, seed, dropout_rate=dropout_rate, training=True))
    scaled2 = out2_eval * scale
    ok2 = (out2_train == 0.0) | (jnp.abs(out2_train - scaled2)
                                 <= 1e-3 + 1e-2 * jnp.abs(scaled2))
    assert bool(jnp.all(ok2)), "k-grid dropout values inconsistent"

    print("KERNEL_OK")
</pallas_src>

<mosaic_0001>
module attributes {stable_mosaic.version = 11 : i64} {
  func.func @_mlp_kernel_single(%arg0: i32, %arg1: i32, %arg2: memref<1xi32, #tpu.memory_space<smem>>, %arg3: memref<128x512xf32, #tpu.memory_space<vmem>>, %arg4: memref<512x256xbf16, #tpu.memory_space<vmem>>, %arg5: memref<1x256xf32, #tpu.memory_space<vmem>>, %arg6: memref<128x256xf32, #tpu.memory_space<vmem>>) attributes {dimension_semantics = [#tpu.dimension_semantics<parallel>, #tpu.dimension_semantics<parallel>], iteration_bounds = array<i64: 2, 1>, scalar_prefetch = 1 : i64, scratch_operands = 0 : i64, tpu.core_type = #tpu.core_type<tc>, window_params = [{transform_indices = @transform_0, window_bounds = array<i64: 128, 512>}, {transform_indices = @transform_1, window_bounds = array<i64: 512, 256>}, {transform_indices = @transform_2, window_bounds = array<i64: 1, 256>}, {transform_indices = @transform_3, window_bounds = array<i64: 128, 256>}]} {
    %c0 = arith.constant 0 : index
    %c0_0 = arith.constant 0 : index
    %0 = vector.load %arg3[%c0, %c0_0] : memref<128x512xf32, #tpu.memory_space<vmem>>, vector<128x512xf32>
    %1 = arith.truncf %0 : vector<128x512xf32> to vector<128x512xbf16>
    %c0_1 = arith.constant 0 : index
    %c0_2 = arith.constant 0 : index
    %2 = vector.load %arg4[%c0_1, %c0_2] : memref<512x256xbf16, #tpu.memory_space<vmem>>, vector<512x256xbf16>
    %cst = arith.constant dense<0.000000e+00> : vector<128x256xf32>
    %3 = tpu.matmul %1, %2, %cst {dimension_numbers = #tpu.dot_dimension_numbers<[1], [0], [0], [1], [0, 0, 1, 1], [], []>} : vector<128x512xbf16>, vector<512x256xbf16>, vector<128x256xf32> -> vector<128x256xf32>
    %c0_3 = arith.constant 0 : index
    %c0_4 = arith.constant 0 : index
    %4 = vector.load %arg5[%c0_3, %c0_4] : memref<1x256xf32, #tpu.memory_space<vmem>>, vector<1x256xf32>
    %5 = vector.broadcast %4 : vector<1x256xf32> to vector<128x256xf32>
    %6 = arith.addf %3, %5 : vector<128x256xf32>
    %cst_5 = arith.constant 0.000000e+00 : f32
    %7 = vector.broadcast %cst_5 : f32 to vector<128x256xf32>
    %8 = arith.maximumf %6, %7 : vector<128x256xf32>
    %c0_6 = arith.constant 0 : index
    %c0_7 = arith.constant 0 : index
    %9 = vector.load %arg6[%c0_6, %c0_7] : memref<128x256xf32, #tpu.memory_space<vmem>>, vector<128x256xf32>
    tpu.vector_store %arg6[%c0_6, %c0_7], %8 {strides = array<i32>} : memref<128x256xf32, #tpu.memory_space<vmem>>, vector<128x256xf32>,
    return
  }
  func.func @transform_0(%arg0: i32, %arg1: i32, %arg2: memref<1xi32, #tpu.memory_space<smem>>) -> (i32, i32) {
    %c0_i32 = arith.constant 0 : i32
    %c0_i32_0 = arith.constant 0 : i32
    return %arg0, %c0_i32 : i32, i32
  }
  func.func @transform_1(%arg0: i32, %arg1: i32, %arg2: memref<1xi32, #tpu.memory_space<smem>>) -> (i32, i32) {
    %c0_i32 = arith.constant 0 : i32
    %c0_i32_0 = arith.constant 0 : i32
    return %c0_i32, %arg1 : i32, i32
  }
  func.func @transform_2(%arg0: i32, %arg1: i32, %arg2: memref<1xi32, #tpu.memory_space<smem>>) -> (i32, i32) {
    %c0_i32 = arith.constant 0 : i32
    %c0_i32_0 = arith.constant 0 : i32
    return %c0_i32, %arg1 : i32, i32
  }
  func.func @transform_3(%arg0: i32, %arg1: i32, %arg2: memref<1xi32, #tpu.memory_space<smem>>) -> (i32, i32) {
    %c0_i32 = arith.constant 0 : i32
    return %arg0, %arg1 : i32, i32
  }
}

</mosaic_0001>

<llo_original>
// kernel: tpu_custom_call.1
$region0: #{tpu_custom_call.1}
  #allocation0 [shape = 'u32[]', space=smem, size = 0x4, offset = 0x4, fixed_abs, tag = 'smem constant byte address 0x4 - core index']
  #allocation1 [shape = 'u32[72,128]{1,0:T(1,128)}', space=vmem, size = 0x9000, scoped, tag = 'internal scratch']
  #allocation2 [shape = 's32[1]{0}', space=sflag, size = 0x4, scoped, tag = 'scoped memory for tpu_custom_call.1']
  #allocation3 [shape = 's32[1]{0:T(128)S(6)}', space=smem, size = 0x200, scoped, tag = 'prefetched SMEM operand 0']
  %s0 = inlined_call_operand.<no memory space> [shape: s32[1], index: 0, kind: input, shape index: {}]
  %s1 = inlined_call_operand.hbm [shape: f32[256,512], index: 1, kind: input, shape index: {}]
  %s2 = inlined_call_operand.hbm [shape: bf16[512,256], index: 2, kind: input, shape index: {}]
  %s3 = inlined_call_operand.vmem [shape: f32[1,256], index: 3, kind: input, shape index: {}]
  %s4 = inlined_call_operand.hbm [shape: f32[256,256], index: 4, kind: output, shape index: {}]
  %s5 = sld [smem:[#allocation0]]
  $region53: #{tpu_custom_call.1} parent=0
    _
  %s7 = ssub.s32 1, %s5
  %s8 = scalar_select 0, %s7, %s5
  %9 = sst [smem:[#allocation3]] %s0
  $region1: #{tpu_custom_call.1} parent=0
    #allocation4 [shape = 'u8[524288]{0}', space=vmem, size = 0x80000, scoped, tag = 'input window, operand 1']
    #allocation5 [shape = 's32[2]{0}', space=sflag, size = 0x8, scoped, tag = 'scoped memory for tpu_custom_call.1']
    #allocation6 [shape = 's32[2]{0}', space=sflag, size = 0x8, scoped, tag = 'scoped memory for tpu_custom_call.1']
    #allocation7 [shape = 'u8[262144]{0}', space=vmem, size = 0x40000, scoped, tag = 'input window, operand 2, single buffered']
    #allocation8 [shape = 's32[1]{0}', space=sflag, size = 0x4, scoped, tag = 'scoped memory for tpu_custom_call.1']
    #allocation9 [shape = 'u8[262144]{0}', space=vmem, size = 0x40000, scoped, tag = 'output window, operand 0']
    %10 = vsyncpa [#allocation5], 0
    %s11 = scalar_lea.sflag [#allocation5], 1
    %12 = vsyncpa %s11, 0
    %13 = vsyncpa [#allocation8], 0
    %14 = vsyncpa [#allocation6], 0
    %s15 = scalar_lea.sflag [#allocation6], 1
    %16 = vsyncpa %s15, 0
    loop: start=0, step=1, limit=4
    $region2: #{tpu_custom_call.1} parent=1 // loop_pre_header
      _
    $region3: #{tpu_custom_call.1} parent=1 // loop_header
      %s18 = sphi 0, %s22
      %p19 = scmp.ge.s32.totalorder %s18, 4
      %s25 = sphi 0, %s37
      %s26 = sphi 0, %s33
      %s27 = sphi 0, %s25
      %s28 = sphi 0, %s26
      %s29 = sphi 0, %s27
      %s30 = sphi 0, %s28
      %s40 = sphi 0, %s42
      %s43 = sphi 0, %s40
      %s44 = sphi 0, %s43
      %s60 = sphi 0, %s44
      %s66 = sphi 0, %s68
      %s69 = sphi 0, %s66
      %s70 = sphi 0, %s69
      %s86 = sphi 0, %s70
      %s92 = sphi 0, %s94
      %s95 = sphi 0, %s92
      %s96 = sphi 0, %s95
      %s112 = sphi 0, %s96
      %s120 = sphi 0, %s122
      %s123 = sphi 0, %s120
      %s124 = sphi 0, %s123
      %s140 = sphi 0, %s124
    $region4: #{tpu_custom_call.1} parent=1 // loop_header_branch
      %21 = sbr.rel (%p19) target = $region8
    $region5: #{tpu_custom_call.1} parent=1 // loop_body
      %s23 = ssub.s32 %s18, 1
      %s24 = ssub.s32 %s18, 2
      %s31 = sadd.s32 1, %s26
      %p32 = scmp.ge.s32.totalorder %s31, 1
      %s33 = scalar_select %p32, 0, %s31
      %s34 = sadd.s32 1, %s25
      %s35 = scalar_select %p32, %s34, %s25
      %p36 = scmp.ge.s32.totalorder %s35, 2
      %s37 = scalar_select %p36, 0, %s35
      %s38 = ssub.s32 %s25, %s37
      %p39 = scmp.eq.s32.totalorder %s38, 0
      %s41 = sadd.s32 %s40, 1
      %s42 = scalar_select %p39, %s40, %s41
      %p45 = pneg %p39
      %p46 = scmp.eq.s32.totalorder %s18, 1
      %p47 = por %p45, %p46
      %p48 = scmp.ne.s32.totalorder %s40, %s43
      %p49 = scmp.eq.s32.totalorder %s18, 0
      %p50 = por %p48, %p49
      %p51 = scmp.ne.s32.totalorder %s40, %s43
      %p52 = scmp.eq.s32.totalorder %s23, 1
      %p53 = por %p51, %p52
      %p54 = scmp.ne.s32.totalorder %s43, %s44
      %p55 = scmp.eq.s32.totalorder %s23, 0
      %p56 = por %p54, %p55
      %p57 = scmp.ne.s32.totalorder %s43, %s44
      %p58 = scmp.eq.s32.totalorder %s24, 1
      %p59 = por %p57, %p58
      %p61 = scmp.ne.s32.totalorder %s44, %s60
      %p62 = scmp.eq.s32.totalorder %s24, 0
      %p63 = por %p61, %p62
      %s64 = ssub.s32 %s26, %s33
      %p65 = scmp.eq.s32.totalorder %s64, 0
      %s67 = sadd.s32 %s66, 1
      %s68 = scalar_select %p65, %s66, %s67
      %p71 = pneg %p65
      %p72 = scmp.eq.s32.totalorder %s18, 1
      %p73 = por %p71, %p72
      %p74 = scmp.ne.s32.totalorder %s66, %s69
      %p75 = scmp.eq.s32.totalorder %s18, 0
      %p76 = por %p74, %p75
      %p77 = scmp.ne.s32.totalorder %s66, %s69
      %p78 = scmp.eq.s32.totalorder %s23, 1
      %p79 = por %p77, %p78
      %p80 = scmp.ne.s32.totalorder %s69, %s70
      %p81 = scmp.eq.s32.totalorder %s23, 0
      %p82 = por %p80, %p81
      %p83 = scmp.ne.s32.totalorder %s69, %s70
      %p84 = scmp.eq.s32.totalorder %s24, 1
      %p85 = por %p83, %p84
      %p87 = scmp.ne.s32.totalorder %s70, %s86
      %p88 = scmp.eq.s32.totalorder %s24, 0
      %p89 = por %p87, %p88
      %s90 = ssub.s32 %s26, %s33
      %p91 = scmp.eq.s32.totalorder %s90, 0
      %s93 = sadd.s32 %s92, 1
      %s94 = scalar_select %p91, %s92, %s93
      %p97 = pneg %p91
      %p98 = scmp.eq.s32.totalorder %s18, 1
      %p99 = por %p97, %p98
      %p100 = scmp.ne.s32.totalorder %s92, %s95
      %p101 = scmp.eq.s32.totalorder %s18, 0
      %p102 = por %p100, %p101
      %p103 = scmp.ne.s32.totalorder %s92, %s95
      %p104 = scmp.eq.s32.totalorder %s23, 1
      %p105 = por %p103, %p104
      %p106 = scmp.ne.s32.totalorder %s95, %s96
      %p107 = scmp.eq.s32.totalorder %s23, 0
      %p108 = por %p106, %p107
      %p109 = scmp.ne.s32.totalorder %s95, %s96
      %p110 = scmp.eq.s32.totalorder %s24, 1
      %p111 = por %p109, %p110
      %p113 = scmp.ne.s32.totalorder %s96, %s112
      %p114 = scmp.eq.s32.totalorder %s24, 0
      %p115 = por %p113, %p114
      %s116 = ssub.s32 %s25, %s37
      %s117 = ssub.s32 %s26, %s33
      %s118 = sor.u32 %s116, %s117
      %p119 = scmp.eq.s32.totalorder %s118, 0
      %s121 = sadd.s32 %s120, 1
      %s122 = scalar_select %p119, %s120, %s121
      %p125 = pneg %p119
      %p126 = scmp.eq.s32.totalorder %s18, 1
      %p127 = por %p125, %p126
      %p128 = scmp.ne.s32.totalorder %s120, %s123
      %p129 = scmp.eq.s32.totalorder %s18, 0
      %p130 = por %p128, %p129
      %p131 = scmp.ne.s32.totalorder %s120, %s123
      %p132 = scmp.eq.s32.totalorder %s23, 1
      %p133 = por %p131, %p132
      %p134 = scmp.ne.s32.totalorder %s123, %s124
      %p135 = scmp.eq.s32.totalorder %s23, 0
      %p136 = por %p134, %p135
      %p137 = scmp.ne.s32.totalorder %s123, %s124
      %p138 = scmp.eq.s32.totalorder %s24, 1
      %p139 = por %p137, %p138
      %p141 = scmp.ne.s32.totalorder %s124, %s140
      %p142 = scmp.eq.s32.totalorder %s24, 0
      %p143 = por %p141, %p142
      %p144 = scmp.le.s32.totalorder 1, %s18
      %p145 = scmp.lt.s32.totalorder %s18, 3
      %p146 = pnand %p144, %p145
      %p147 = pneg %p146
      // Predicated region
      $region9: #{tpu_custom_call.1} parent=5 // pred_check
        _
      $region10: #{tpu_custom_call.1} parent=5 // pred_check_branch
        %149 = sbr.rel (%p146) target = $region12
      $region11: #{tpu_custom_call.1} parent=5 // pred_region
        %s150 = ssub.s32 %s18, 1
        // Predicated region
        $region13: #{tpu_custom_call.1} parent=11 // pred_check
          %p151 = pneg %p82
        $region14: #{tpu_custom_call.1} parent=11 // pred_check_branch
          %153 = sbr.rel (%p151) target = $region16
        $region15: #{tpu_custom_call.1} parent=11 // pred_region
          %s154 = smul.u32 2, %s28
          %156 = vsyncadd [#allocation8], 0
          %s157 = smul.addr %s154, 4
          %s158 = scalar_lea.hbm %s2, %s157
          %s159 = sshll.u32 %s158, 4
          %s160 = int_to_ptr.hbm [resolvable:$true] %s159
          %s161 = sshll.u32 [#allocation7], 4
          %s162 = int_to_ptr.vmem [resolvable:$true] %s161
          %167 = dma.hbm_to_vmem [thread:$0]  %s160, 8192, %s162, [#allocation8], 128, 128, 8
        $region16: #{tpu_custom_call.1} parent=11 // pred_fallthru
          _
        // Predicated region
        $region17: #{tpu_custom_call.1} parent=11 // pred_check
          %p168 = pneg %p108
        $region18: #{tpu_custom_call.1} parent=11 // pred_check_branch
          %170 = sbr.rel (%p168) target = $region20
        $region19: #{tpu_custom_call.1} parent=11 // pred_region
          %s171 = smul.u32 2, %s28
          %p172 = scmp.lt.s32.totalorder %s171, 1
          %s173 = scalar_select %p172, %s171, 1
          %s174 = scalar_lea.vmem %s3, %s173
          %s175 = smul.u32 2, %s28
        $region20: #{tpu_custom_call.1} parent=11 // pred_fallthru
          _
      $region12: #{tpu_custom_call.1} parent=5 // pred_fallthru
        _
      %p176 = scmp.lt.s32.totalorder %s18, 2
      // Predicated region
      $region21: #{tpu_custom_call.1} parent=5 // pred_check
        %p177 = pneg %p176
      $region22: #{tpu_custom_call.1} parent=5 // pred_check_branch
        %179 = sbr.rel (%p177) target = $region24
      $region23: #{tpu_custom_call.1} parent=5 // pred_region
        // Predicated region
        $region25: #{tpu_custom_call.1} parent=23 // pred_check
          %p180 = pneg %p50
        $region26: #{tpu_custom_call.1} parent=23 // pred_check_branch
          %182 = sbr.rel (%p180) target = $region28
        $region27: #{tpu_custom_call.1} parent=23 // pred_region
          %s183 = sand.u32 %s40, 1
          %s184 = scalar_lea.sflag [#allocation5], %s183
          %s185 = sand.u32 %s40, 1
          %s186 = smul.addr %s185, 512
          %s187 = scalar_lea.vmem [#allocation4], %s186
          %s188 = smul.u32 16, %s25
          %190 = vsyncadd %s184, 0
          %s191 = smul.addr %s188, 4
          %s192 = smul.addr %s191, 8
          %s193 = scalar_lea.hbm %s1, %s192
          %s194 = sshll.u32 %s193, 4
          %s195 = int_to_ptr.hbm [resolvable:$true] %s194
          %s196 = sshll.u32 %s187, 4
          %s197 = int_to_ptr.vmem [resolvable:$true] %s196
          %202 = dma.hbm_to_vmem [thread:$0]  %s195, 8192, %s197, %s184, 512, 512, 32
        $region28: #{tpu_custom_call.1} parent=23 // pred_fallthru
          _
      $region24: #{tpu_custom_call.1} parent=5 // pred_fallthru
        _
      %p203 = scmp.le.s32.totalorder 1, %s18
      %p204 = scmp.lt.s32.totalorder %s18, 3
      %p205 = pnand %p203, %p204
      %p206 = pneg %p205
      // Predicated region
      $region29: #{tpu_custom_call.1} parent=5 // pred_check
        _
      $region30: #{tpu_custom_call.1} parent=5 // pred_check_branch
        %208 = sbr.rel (%p205) target = $region32
      $region31: #{tpu_custom_call.1} parent=5 // pred_region
        %s209 = ssub.s32 %s18, 1
        %s210 = sand.u32 %s43, 1
        %s211 = scalar_lea.sflag [#allocation5], %s210
        %s212 = sand.u32 %s43, 1
        %s213 = smul.addr %s212, 512
        %s214 = scalar_lea.vmem [#allocation4], %s213
        // Predicated region
        $region33: #{tpu_custom_call.1} parent=31 // pred_check
          %p215 = pneg %p56
        $region34: #{tpu_custom_call.1} parent=31 // pred_check_branch
          %217 = sbr.rel (%p215) target = $region36
        $region35: #{tpu_custom_call.1} parent=31 // pred_region
          %219 = dma.done %s211, 8192
        $region36: #{tpu_custom_call.1} parent=31 // pred_fallthru
          _
        // Predicated region
        $region37: #{tpu_custom_call.1} parent=31 // pred_check
          %p220 = pneg %p82
        $region38: #{tpu_custom_call.1} parent=31 // pred_check_branch
          %222 = sbr.rel (%p220) target = $region40
        $region39: #{tpu_custom_call.1} parent=31 // pred_region
          %224 = dma.done [#allocation8], 8192
        $region40: #{tpu_custom_call.1} parent=31 // pred_fallthru
          _
        %s225 = sand.u32 %s43, 1
        %s226 = scalar_lea.sflag [#allocation5], %s225
        %s227 = sand.u32 %s43, 1
        %s228 = smul.addr %s227, 512
        %s229 = scalar_lea.vmem [#allocation4], %s228
        %p230 = pneg %p56
        %p231 = pneg %p53
        %p232 = pneg %p82
        %p233 = pneg %p79
        %s234 = smul.u32 2, %s28
        %p235 = scmp.lt.s32.totalorder %s234, 1
        %s236 = scalar_select %p235, %s234, 1
        %s237 = scalar_lea.vmem %s3, %s236
        %p238 = pneg %p108
        %p239 = pneg %p105
        %p240 = pneg %p136
        %p241 = pneg %p133
        %s242 = sand.u32 %s123, 1
        %s243 = scalar_lea.sflag [#allocation6], %s242
        %s244 = sand.u32 %s123, 1
        %s245 = smul.addr %s244, 256
        %s246 = scalar_lea.vmem [#allocation9], %s245
        %s247 = smul.u32 16, %s27
        %s248 = smul.u32 2, %s28
        %s249 = smul.u32 2, %s28
        %p250 = scmp.lt.s32.totalorder %s249, 1
        %s251 = scalar_select %p250, %s249, 1
        %s252 = scalar_lea.vmem %s3, %s251
        %s253 = smul.u32 2, %s28
        %s254 = smul.u32 16, %s27
        %s255 = smul.u32 2, %s28
        %v256 = vld [vmem:[%s214] sm:$0xff]
        %v257 = vld [vmem:[%s214 + $0x8] sm:$0xff]
        %v258 = vld [vmem:[%s214 + $0x10] sm:$0xff]
        %v259 = vld [vmem:[%s214 + $0x18] sm:$0xff]
        %v260 = vld [vmem:[%s214 + $0x20] sm:$0xff]
        %v261 = vld [vmem:[%s214 + $0x28] sm:$0xff]
        %v262 = vld [vmem:[%s214 + $0x30] sm:$0xff]
        %v263 = vld [vmem:[%s214 + $0x38] sm:$0xff]
        %v264 = vld [vmem:[%s214 + $0x40] sm:$0xff]
        %v265 = vld [vmem:[%s214 + $0x48] sm:$0xff]
        %v266 = vld [vmem:[%s214 + $0x50] sm:$0xff]
        %v267 = vld [vmem:[%s214 + $0x58] sm:$0xff]
        %v268 = vld [vmem:[%s214 + $0x60] sm:$0xff]
        %v269 = vld [vmem:[%s214 + $0x68] sm:$0xff]
        %v270 = vld [vmem:[%s214 + $0x70] sm:$0xff]
        %v271 = vld [vmem:[%s214 + $0x78] sm:$0xff]
        %v272 = vld [vmem:[%s214 + $0x80] sm:$0xff]
        %v273 = vld [vmem:[%s214 + $0x88] sm:$0xff]
        %v274 = vld [vmem:[%s214 + $0x90] sm:$0xff]
        %v275 = vld [vmem:[%s214 + $0x98] sm:$0xff]
        %v276 = vld [vmem:[%s214 + $0xa0] sm:$0xff]
        %v277 = vld [vmem:[%s214 + $0xa8] sm:$0xff]
        %v278 = vld [vmem:[%s214 + $0xb0] sm:$0xff]
        %v279 = vld [vmem:[%s214 + $0xb8] sm:$0xff]
        %v280 = vld [vmem:[%s214 + $0xc0] sm:$0xff]
        %v281 = vld [vmem:[%s214 + $0xc8] sm:$0xff]
        %v282 = vld [vmem:[%s214 + $0xd0] sm:$0xff]
        %v283 = vld [vmem:[%s214 + $0xd8] sm:$0xff]
        %v284 = vld [vmem:[%s214 + $0xe0] sm:$0xff]
        %v285 = vld [vmem:[%s214 + $0xe8] sm:$0xff]
        %v286 = vld [vmem:[%s214 + $0xf0] sm:$0xff]
        %v287 = vld [vmem:[%s214 + $0xf8] sm:$0xff]
        %v288 = vld [vmem:[%s214 + $0x100] sm:$0xff]
        %v289 = vld [vmem:[%s214 + $0x108] sm:$0xff]
        %v290 = vld [vmem:[%s214 + $0x110] sm:$0xff]
        %v291 = vld [vmem:[%s214 + $0x118] sm:$0xff]
        %v292 = vld [vmem:[%s214 + $0x120] sm:$0xff]
        %v293 = vld [vmem:[%s214 + $0x128] sm:$0xff]
        %v294 = vld [vmem:[%s214 + $0x130] sm:$0xff]
        %v295 = vld [vmem:[%s214 + $0x138] sm:$0xff]
        %v296 = vld [vmem:[%s214 + $0x140] sm:$0xff]
        %v297 = vld [vmem:[%s214 + $0x148] sm:$0xff]
        %v298 = vld [vmem:[%s214 + $0x150] sm:$0xff]
        %v299 = vld [vmem:[%s214 + $0x158] sm:$0xff]
        %v300 = vld [vmem:[%s214 + $0x160] sm:$0xff]
        %v301 = vld [vmem:[%s214 + $0x168] sm:$0xff]
        %v302 = vld [vmem:[%s214 + $0x170] sm:$0xff]
        %v303 = vld [vmem:[%s214 + $0x178] sm:$0xff]
        %v304 = vld [vmem:[%s214 + $0x180] sm:$0xff]
        %v305 = vld [vmem:[%s214 + $0x188] sm:$0xff]
        %v306 = vld [vmem:[%s214 + $0x190] sm:$0xff]
        %v307 = vld [vmem:[%s214 + $0x198] sm:$0xff]
        %v308 = vld [vmem:[%s214 + $0x1a0] sm:$0xff]
        %v309 = vld [vmem:[%s214 + $0x1a8] sm:$0xff]
        %v310 = vld [vmem:[%s214 + $0x1b0] sm:$0xff]
        %v311 = vld [vmem:[%s214 + $0x1b8] sm:$0xff]
        %v312 = vld [vmem:[%s214 + $0x1c0] sm:$0xff]
        %v313 = vld [vmem:[%s214 + $0x1c8] sm:$0xff]
        %v314 = vld [vmem:[%s214 + $0x1d0] sm:$0xff]
        %v315 = vld [vmem:[%s214 + $0x1d8] sm:$0xff]
        %v316 = vld [vmem:[%s214 + $0x1e0] sm:$0xff]
        %v317 = vld [vmem:[%s214 + $0x1e8] sm:$0xff]
        %v318 = vld [vmem:[%s214 + $0x1f0] sm:$0xff]
        %v319 = vld [vmem:[%s214 + $0x1f8] sm:$0xff]
        %v320 = vpack.c.bf16 %v260, %v256
        %v321 = vpack.c.bf16 %v261, %v257
        %v322 = vpack.c.bf16 %v262, %v258
        %v323 = vpack.c.bf16 %v263, %v259
        %v324 = vpack.c.bf16 %v268, %v264
        %v325 = vpack.c.bf16 %v269, %v265
        %v326 = vpack.c.bf16 %v270, %v266
        %v327 = vpack.c.bf16 %v271, %v267
        %v328 = vpack.c.bf16 %v276, %v272
        %v329 = vpack.c.bf16 %v277, %v273
        %v330 = vpack.c.bf16 %v278, %v274
        %v331 = vpack.c.bf16 %v279, %v275
        %v332 = vpack.c.bf16 %v284, %v280
        %v333 = vpack.c.bf16 %v285, %v281
        %v334 = vpack.c.bf16 %v286, %v282
        %v335 = vpack.c.bf16 %v287, %v283
        %v336 = vpack.c.bf16 %v292, %v288
        %v337 = vpack.c.bf16 %v293, %v289
        %v338 = vpack.c.bf16 %v294, %v290
        %v339 = vpack.c.bf16 %v295, %v291
        %v340 = vpack.c.bf16 %v300, %v296
        %v341 = vpack.c.bf16 %v301, %v297
        %v342 = vpack.c.bf16 %v302, %v298
        %v343 = vpack.c.bf16 %v303, %v299
        %v344 = vpack.c.bf16 %v308, %v304
        %v345 = vpack.c.bf16 %v309, %v305
        %v346 = vpack.c.bf16 %v310, %v306
        %v347 = vpack.c.bf16 %v311, %v307
        %v348 = vpack.c.bf16 %v316, %v312
        %v349 = vpack.c.bf16 %v317, %v313
        %v350 = vpack.c.bf16 %v318, %v314
        %v351 = vpack.c.bf16 %v319, %v315
        %v352 = vld [vmem:[#allocation7] sm:$0xff]
        %v353 = vld [vmem:[#allocation7 + $0x8] sm:$0xff]
        %v354 = vld [vmem:[#allocation7 + $0x10] sm:$0xff]
        %v355 = vld [vmem:[#allocation7 + $0x18] sm:$0xff]
        %v356 = vld [vmem:[#allocation7 + $0x20] sm:$0xff]
        %v357 = vld [vmem:[#allocation7 + $0x28] sm:$0xff]
        %v358 = vld [vmem:[#allocation7 + $0x30] sm:$0xff]
        %v359 = vld [vmem:[#allocation7 + $0x38] sm:$0xff]
        %v360 = vld [vmem:[#allocation7 + $0x40] sm:$0xff]
        %v361 = vld [vmem:[#allocation7 + $0x48] sm:$0xff]
        %v362 = vld [vmem:[#allocation7 + $0x50] sm:$0xff]
        %v363 = vld [vmem:[#allocation7 + $0x58] sm:$0xff]
        %v364 = vld [vmem:[#allocation7 + $0x60] sm:$0xff]
        %v365 = vld [vmem:[#allocation7 + $0x68] sm:$0xff]
        %v366 = vld [vmem:[#allocation7 + $0x70] sm:$0xff]
        %v367 = vld [vmem:[#allocation7 + $0x78] sm:$0xff]
        %v368 = vld [vmem:[#allocation7 + $0x80] sm:$0xff]
        %v369 = vld [vmem:[#allocation7 + $0x88] sm:$0xff]
        %v370 = vld [vmem:[#allocation7 + $0x90] sm:$0xff]
        %v371 = vld [vmem:[#allocation7 + $0x98] sm:$0xff]
        %v372 = vld [vmem:[#allocation7 + $0xa0] sm:$0xff]
        %v373 = vld [vmem:[#allocation7 + $0xa8] sm:$0xff]
        %v374 = vld [vmem:[#allocation7 + $0xb0] sm:$0xff]
        %v375 = vld [vmem:[#allocation7 + $0xb8] sm:$0xff]
        %v376 = vld [vmem:[#allocation7 + $0xc0] sm:$0xff]
        %v377 = vld [vmem:[#allocation7 + $0xc8] sm:$0xff]
        %v378 = vld [vmem:[#allocation7 + $0xd0] sm:$0xff]
        %v379 = vld [vmem:[#allocation7 + $0xd8] sm:$0xff]
        %v380 = vld [vmem:[#allocation7 + $0xe0] sm:$0xff]
        %v381 = vld [vmem:[#allocation7 + $0xe8] sm:$0xff]
        %v382 = vld [vmem:[#allocation7 + $0xf0] sm:$0xff]
        %v383 = vld [vmem:[#allocation7 + $0xf8] sm:$0xff]
        %v384 = vld [vmem:[#allocation7 + $0x100] sm:$0xff]
        %v385 = vld [vmem:[#allocation7 + $0x108] sm:$0xff]
        %v386 = vld [vmem:[#allocation7 + $0x110] sm:$0xff]
        %v387 = vld [vmem:[#allocation7 + $0x118] sm:$0xff]
        %v388 = vld [vmem:[#allocation7 + $0x120] sm:$0xff]
        %v389 = vld [vmem:[#allocation7 + $0x128] sm:$0xff]
        %v390 = vld [vmem:[#allocation7 + $0x130] sm:$0xff]
        %v391 = vld [vmem:[#allocation7 + $0x138] sm:$0xff]
        %v392 = vld [vmem:[#allocation7 + $0x140] sm:$0xff]
        %v393 = vld [vmem:[#allocation7 + $0x148] sm:$0xff]
        %v394 = vld [vmem:[#allocation7 + $0x150] sm:$0xff]
        %v395 = vld [vmem:[#allocation7 + $0x158] sm:$0xff]
        %v396 = vld [vmem:[#allocation7 + $0x160] sm:$0xff]
        %v397 = vld [vmem:[#allocation7 + $0x168] sm:$0xff]
        %v398 = vld [vmem:[#allocation7 + $0x170] sm:$0xff]
        %v399 = vld [vmem:[#allocation7 + $0x178] sm:$0xff]
        %v400 = vld [vmem:[#allocation7 + $0x180] sm:$0xff]
        %v401 = vld [vmem:[#allocation7 + $0x188] sm:$0xff]
        %v402 = vld [vmem:[#allocation7 + $0x190] sm:$0xff]
        %v403 = vld [vmem:[#allocation7 + $0x198] sm:$0xff]
        %v404 = vld [vmem:[#allocation7 + $0x1a0] sm:$0xff]
        %v405 = vld [vmem:[#allocation7 + $0x1a8] sm:$0xff]
        %v406 = vld [vmem:[#allocation7 + $0x1b0] sm:$0xff]
        %v407 = vld [vmem:[#allocation7 + $0x1b8] sm:$0xff]
        %v408 = vld [vmem:[#allocation7 + $0x1c0] sm:$0xff]
        %v409 = vld [vmem:[#allocation7 + $0x1c8] sm:$0xff]
        %v410 = vld [vmem:[#allocation7 + $0x1d0] sm:$0xff]
        %v411 = vld [vmem:[#allocation7 + $0x1d8] sm:$0xff]
        %v412 = vld [vmem:[#allocation7 + $0x1e0] sm:$0xff]
        %v413 = vld [vmem:[#allocation7 + $0x1e8] sm:$0xff]
        %v414 = vld [vmem:[#allocation7 + $0x1f0] sm:$0xff]
        %v415 = vld [vmem:[#allocation7 + $0x1f8] sm:$0xff]
        %v416 = vld [vmem:[%s252] sm:$0x3]
        %v418 = vperm.slane %v416, 0
        %v419 = vperm.slane %v416, 1
        %v486 = vunpack.c.l.b16 %v352
        %v487 = vunpack.c.h.b16 %v352
        %v488 = vunpack.c.l.b16 %v353
        %v489 = vunpack.c.h.b16 %v353
        %v490 = vunpack.c.l.b16 %v354
        %v491 = vunpack.c.h.b16 %v354
        %v492 = vunpack.c.l.b16 %v355
        %v493 = vunpack.c.h.b16 %v355
        %v494 = vunpack.c.l.b16 %v356
        %v495 = vunpack.c.h.b16 %v356
        %v496 = vunpack.c.l.b16 %v357
        %v497 = vunpack.c.h.b16 %v357
        %v498 = vunpack.c.l.b16 %v358
        %v499 = vunpack.c.h.b16 %v358
        %v500 = vunpack.c.l.b16 %v359
        %v501 = vunpack.c.h.b16 %v359
        %v502 = vunpack.c.l.b16 %v360
        %v503 = vunpack.c.h.b16 %v360
        %v504 = vunpack.c.l.b16 %v361
        %v505 = vunpack.c.h.b16 %v361
        %v506 = vunpack.c.l.b16 %v362
        %v507 = vunpack.c.h.b16 %v362
        %v508 = vunpack.c.l.b16 %v363
        %v509 = vunpack.c.h.b16 %v363
        %v510 = vunpack.c.l.b16 %v364
        %v511 = vunpack.c.h.b16 %v364
        %v512 = vunpack.c.l.b16 %v365
        %v513 = vunpack.c.h.b16 %v365
        %v514 = vunpack.c.l.b16 %v366
        %v515 = vunpack.c.h.b16 %v366
        %v516 = vunpack.c.l.b16 %v367
        %v517 = vunpack.c.h.b16 %v367
        %v518 = vunpack.c.l.b16 %v368
        %v519 = vunpack.c.h.b16 %v368
        %v520 = vunpack.c.l.b16 %v369
        %v521 = vunpack.c.h.b16 %v369
        %v522 = vunpack.c.l.b16 %v370
        %v523 = vunpack.c.h.b16 %v370
        %v524 = vunpack.c.l.b16 %v371
        %v525 = vunpack.c.h.b16 %v371
        %v526 = vunpack.c.l.b16 %v372
        %v527 = vunpack.c.h.b16 %v372
        %v528 = vunpack.c.l.b16 %v373
        %v529 = vunpack.c.h.b16 %v373
        %v530 = vunpack.c.l.b16 %v374
        %v531 = vunpack.c.h.b16 %v374
        %v532 = vunpack.c.l.b16 %v375
        %v533 = vunpack.c.h.b16 %v375
        %v534 = vunpack.c.l.b16 %v376
        %v535 = vunpack.c.h.b16 %v376
        %v536 = vunpack.c.l.b16 %v377
        %v537 = vunpack.c.h.b16 %v377
        %v538 = vunpack.c.l.b16 %v378
        %v539 = vunpack.c.h.b16 %v378
        %v540 = vunpack.c.l.b16 %v379
        %v541 = vunpack.c.h.b16 %v379
        %v542 = vunpack.c.l.b16 %v380
        %v543 = vunpack.c.h.b16 %v380
        %v544 = vunpack.c.l.b16 %v381
        %v545 = vunpack.c.h.b16 %v381
        %v546 = vunpack.c.l.b16 %v382
        %v547 = vunpack.c.h.b16 %v382
        %v548 = vunpack.c.l.b16 %v383
        %v549 = vunpack.c.h.b16 %v383
        %v550 = vunpack.c.l.b16 %v384
        %v551 = vunpack.c.h.b16 %v384
        %v552 = vunpack.c.l.b16 %v385
        %v553 = vunpack.c.h.b16 %v385
        %v554 = vunpack.c.l.b16 %v386
        %v555 = vunpack.c.h.b16 %v386
        %v556 = vunpack.c.l.b16 %v387
        %v557 = vunpack.c.h.b16 %v387
        %v558 = vunpack.c.l.b16 %v388
        %v559 = vunpack.c.h.b16 %v388
        %v560 = vunpack.c.l.b16 %v389
        %v561 = vunpack.c.h.b16 %v389
        %v562 = vunpack.c.l.b16 %v390
        %v563 = vunpack.c.h.b16 %v390
        %v564 = vunpack.c.l.b16 %v391
        %v565 = vunpack.c.h.b16 %v391
        %v566 = vunpack.c.l.b16 %v392
        %v567 = vunpack.c.h.b16 %v392
        %v568 = vunpack.c.l.b16 %v393
        %v569 = vunpack.c.h.b16 %v393
        %v570 = vunpack.c.l.b16 %v394
        %v571 = vunpack.c.h.b16 %v394
        %v572 = vunpack.c.l.b16 %v395
        %v573 = vunpack.c.h.b16 %v395
        %v574 = vunpack.c.l.b16 %v396
        %v575 = vunpack.c.h.b16 %v396
        %v576 = vunpack.c.l.b16 %v397
        %v577 = vunpack.c.h.b16 %v397
        %v578 = vunpack.c.l.b16 %v398
        %v579 = vunpack.c.h.b16 %v398
        %v580 = vunpack.c.l.b16 %v399
        %v581 = vunpack.c.h.b16 %v399
        %v582 = vunpack.c.l.b16 %v400
        %v583 = vunpack.c.h.b16 %v400
        %v584 = vunpack.c.l.b16 %v401
        %v585 = vunpack.c.h.b16 %v401
        %v586 = vunpack.c.l.b16 %v402
        %v587 = vunpack.c.h.b16 %v402
        %v588 = vunpack.c.l.b16 %v403
        %v589 = vunpack.c.h.b16 %v403
        %v590 = vunpack.c.l.b16 %v404
        %v591 = vunpack.c.h.b16 %v404
        %v592 = vunpack.c.l.b16 %v405
        %v593 = vunpack.c.h.b16 %v405
        %v594 = vunpack.c.l.b16 %v406
        %v595 = vunpack.c.h.b16 %v406
        %v596 = vunpack.c.l.b16 %v407
        %v597 = vunpack.c.h.b16 %v407
        %v598 = vunpack.c.l.b16 %v408
        %v599 = vunpack.c.h.b16 %v408
        %v600 = vunpack.c.l.b16 %v409
        %v601 = vunpack.c.h.b16 %v409
        %v602 = vunpack.c.l.b16 %v410
        %v603 = vunpack.c.h.b16 %v410
        %v604 = vunpack.c.l.b16 %v411
        %v605 = vunpack.c.h.b16 %v411
        %v606 = vunpack.c.l.b16 %v412
        %v607 = vunpack.c.h.b16 %v412
        %v608 = vunpack.c.l.b16 %v413
        %v609 = vunpack.c.h.b16 %v413
        %v610 = vunpack.c.l.b16 %v414
        %v611 = vunpack.c.h.b16 %v414
        %v612 = vunpack.c.l.b16 %v415
        %v613 = vunpack.c.h.b16 %v415
        %v614 = vpack.c.b16 %v488, %v486
        %v615 = vpack.c.b16 %v489, %v487
        %v616 = vpack.c.b16 %v492, %v490
        %v617 = vpack.c.b16 %v493, %v491
        %v618 = vpack.c.b16 %v496, %v494
        %v619 = vpack.c.b16 %v497, %v495
        %v620 = vpack.c.b16 %v500, %v498
        %v621 = vpack.c.b16 %v501, %v499
        %v622 = vpack.c.b16 %v504, %v502
        %v623 = vpack.c.b16 %v505, %v503
        %v624 = vpack.c.b16 %v508, %v506
        %v625 = vpack.c.b16 %v509, %v507
        %v626 = vpack.c.b16 %v512, %v510
        %v627 = vpack.c.b16 %v513, %v511
        %v628 = vpack.c.b16 %v516, %v514
        %v629 = vpack.c.b16 %v517, %v515
        %v630 = vpack.c.b16 %v520, %v518
        %v631 = vpack.c.b16 %v521, %v519
        %v632 = vpack.c.b16 %v524, %v522
        %v633 = vpack.c.b16 %v525, %v523
        %v634 = vpack.c.b16 %v528, %v526
        %v635 = vpack.c.b16 %v529, %v527
        %v636 = vpack.c.b16 %v532, %v530
        %v637 = vpack.c.b16 %v533, %v531
        %v638 = vpack.c.b16 %v536, %v534
        %v639 = vpack.c.b16 %v537, %v535
        %v640 = vpack.c.b16 %v540, %v538
        %v641 = vpack.c.b16 %v541, %v539
        %v642 = vpack.c.b16 %v544, %v542
        %v643 = vpack.c.b16 %v545, %v543
        %v644 = vpack.c.b16 %v548, %v546
        %v645 = vpack.c.b16 %v549, %v547
        %v646 = vpack.c.b16 %v552, %v550
        %v647 = vpack.c.b16 %v553, %v551
        %v648 = vpack.c.b16 %v556, %v554
        %v649 = vpack.c.b16 %v557, %v555
        %v650 = vpack.c.b16 %v560, %v558
        %v651 = vpack.c.b16 %v561, %v559
        %v652 = vpack.c.b16 %v564, %v562
        %v653 = vpack.c.b16 %v565, %v563
        %v654 = vpack.c.b16 %v568, %v566
        %v655 = vpack.c.b16 %v569, %v567
        %v656 = vpack.c.b16 %v572, %v570
        %v657 = vpack.c.b16 %v573, %v571
        %v658 = vpack.c.b16 %v576, %v574
        %v659 = vpack.c.b16 %v577, %v575
        %v660 = vpack.c.b16 %v580, %v578
        %v661 = vpack.c.b16 %v581, %v579
        %v662 = vpack.c.b16 %v584, %v582
        %v663 = vpack.c.b16 %v585, %v583
        %v664 = vpack.c.b16 %v588, %v586
        %v665 = vpack.c.b16 %v589, %v587
        %v666 = vpack.c.b16 %v592, %v590
        %v667 = vpack.c.b16 %v593, %v591
        %v668 = vpack.c.b16 %v596, %v594
        %v669 = vpack.c.b16 %v597, %v595
        %v670 = vpack.c.b16 %v600, %v598
        %v671 = vpack.c.b16 %v601, %v599
        %v672 = vpack.c.b16 %v604, %v602
        %v673 = vpack.c.b16 %v605, %v603
        %v674 = vpack.c.b16 %v608, %v606
        %v675 = vpack.c.b16 %v609, %v607
        %v676 = vpack.c.b16 %v612, %v610
        %v677 = vpack.c.b16 %v613, %v611
        %742 = vmatpush.bf16.msra.mxu0 %v628
        %743 = vmatpush.bf16.msra.mxu0 %v626
        %744 = vmatpush.bf16.msra.mxu0 %v624
        %745 = vmatpush.bf16.msra.mxu0 %v622
        %746 = vmatpush.bf16.msra.mxu0 %v620
        %747 = vmatpush.bf16.msra.mxu0 %v618
        %748 = vmatpush.bf16.msra.mxu0 %v616
        %749 = vmatpush.bf16.msra.mxu0 %v614
        %750 = vmatmul.bf16.gmra.mxu0 %v320
        %v751 = vpop.f32.mrf.mxu0
        %v752 = vadd.f32 %v418, %v751
        %v753 = vpop.f32.mrf.mxu0
        %v754 = vadd.f32 %v418, %v753
        %755 = vmatmul.bf16.gmra.mxu0 %v324
        %v756 = vpop.f32.mrf.mxu0
        %v757 = vadd.f32 %v418, %v756
        %v758 = vpop.f32.mrf.mxu0
        %v759 = vadd.f32 %v418, %v758
        %760 = vmatmul.bf16.gmra.mxu0 %v328
        %v761 = vpop.f32.mrf.mxu0
        %v762 = vadd.f32 %v418, %v761
        %v763 = vpop.f32.mrf.mxu0
        %v764 = vadd.f32 %v418, %v763
        %765 = vmatmul.bf16.gmra.mxu0 %v332
        %v766 = vpop.f32.mrf.mxu0
        %v767 = vadd.f32 %v418, %v766
        %v768 = vpop.f32.mrf.mxu0
        %v769 = vadd.f32 %v418, %v768
        %770 = vmatmul.bf16.gmra.mxu0 %v336
        %v771 = vpop.f32.mrf.mxu0
        %v772 = vadd.f32 %v418, %v771
        %v773 = vpop.f32.mrf.mxu0
        %v774 = vadd.f32 %v418, %v773
        %775 = vmatmul.bf16.gmra.mxu0 %v340
        %v776 = vpop.f32.mrf.mxu0
        %v777 = vadd.f32 %v418, %v776
        %v778 = vpop.f32.mrf.mxu0
        %v779 = vadd.f32 %v418, %v778
        %780 = vmatmul.bf16.gmra.mxu0 %v344
        %v781 = vpop.f32.mrf.mxu0
        %v782 = vadd.f32 %v418, %v781
        %v783 = vpop.f32.mrf.mxu0
        %v784 = vadd.f32 %v418, %v783
        %785 = vmatmul.bf16.gmra.mxu0 %v348
        %v786 = vpop.f32.mrf.mxu0
        %v787 = vadd.f32 %v418, %v786
        %v788 = vpop.f32.mrf.mxu0
        %v789 = vadd.f32 %v418, %v788
        %790 = vdwg.mxu0
        %791 = vmatpush.bf16.msra.mxu0 %v644
        %792 = vmatpush.bf16.msra.mxu0 %v642
        %793 = vmatpush.bf16.msra.mxu0 %v640
        %794 = vmatpush.bf16.msra.mxu0 %v638
        %795 = vmatpush.bf16.msra.mxu0 %v636
        %796 = vmatpush.bf16.msra.mxu0 %v634
        %797 = vmatpush.bf16.msra.mxu0 %v632
        %798 = vmatpush.bf16.msra.mxu0 %v630
        %799 = vmatmul.bf16.gmra.mxu0 %v321
        %v800 = vpop.f32.mrf.mxu0
        %v801 = vadd.f32 %v752, %v800
        %v802 = vpop.f32.mrf.mxu0
        %v803 = vadd.f32 %v754, %v802
        %804 = vmatmul.bf16.gmra.mxu0 %v325
        %v805 = vpop.f32.mrf.mxu0
        %v806 = vadd.f32 %v757, %v805
        %v807 = vpop.f32.mrf.mxu0
        %v808 = vadd.f32 %v759, %v807
        %809 = vmatmul.bf16.gmra.mxu0 %v329
        %v810 = vpop.f32.mrf.mxu0
        %v811 = vadd.f32 %v762, %v810
        %v812 = vpop.f32.mrf.mxu0
        %v813 = vadd.f32 %v764, %v812
        %814 = vmatmul.bf16.gmra.mxu0 %v333
        %v815 = vpop.f32.mrf.mxu0
        %v816 = vadd.f32 %v767, %v815
        %v817 = vpop.f32.mrf.mxu0
        %v818 = vadd.f32 %v769, %v817
        %819 = vmatmul.bf16.gmra.mxu0 %v337
        %v820 = vpop.f32.mrf.mxu0
        %v821 = vadd.f32 %v772, %v820
        %v822 = vpop.f32.mrf.mxu0
        %v823 = vadd.f32 %v774, %v822
        %824 = vmatmul.bf16.gmra.mxu0 %v341
        %v825 = vpop.f32.mrf.mxu0
        %v826 = vadd.f32 %v777, %v825
        %v827 = vpop.f32.mrf.mxu0
        %v828 = vadd.f32 %v779, %v827
        %829 = vmatmul.bf16.gmra.mxu0 %v345
        %v830 = vpop.f32.mrf.mxu0
        %v831 = vadd.f32 %v782, %v830
        %v832 = vpop.f32.mrf.mxu0
        %v833 = vadd.f32 %v784, %v832
        %834 = vmatmul.bf16.gmra.mxu0 %v349
        %v835 = vpop.f32.mrf.mxu0
        %v836 = vadd.f32 %v787, %v835
        %v837 = vpop.f32.mrf.mxu0
        %v838 = vadd.f32 %v789, %v837
        %839 = vdwg.mxu0
        %840 = vmatpush.bf16.msra.mxu0 %v660
        %841 = vmatpush.bf16.msra.mxu0 %v658
        %842 = vmatpush.bf16.msra.mxu0 %v656
        %843 = vmatpush.bf16.msra.mxu0 %v654
        %844 = vmatpush.bf16.msra.mxu0 %v652
        %845 = vmatpush.bf16.msra.mxu0 %v650
        %846 = vmatpush.bf16.msra.mxu0 %v648
        %847 = vmatpush.bf16.msra.mxu0 %v646
        %848 = vmatmul.bf16.gmra.mxu0 %v322
        %v849 = vpop.f32.mrf.mxu0
        %v850 = vadd.f32 %v801, %v849
        %v851 = vpop.f32.mrf.mxu0
        %v852 = vadd.f32 %v803, %v851
        %853 = vmatmul.bf16.gmra.mxu0 %v326
        %v854 = vpop.f32.mrf.mxu0
        %v855 = vadd.f32 %v806, %v854
        %v856 = vpop.f32.mrf.mxu0
        %v857 = vadd.f32 %v808, %v856
        %858 = vmatmul.bf16.gmra.mxu0 %v330
        %v859 = vpop.f32.mrf.mxu0
        %v860 = vadd.f32 %v811, %v859
        %v861 = vpop.f32.mrf.mxu0
        %v862 = vadd.f32 %v813, %v861
        %863 = vmatmul.bf16.gmra.mxu0 %v334
        %v864 = vpop.f32.mrf.mxu0
        %v865 = vadd.f32 %v816, %v864
        %v866 = vpop.f32.mrf.mxu0
        %v867 = vadd.f32 %v818, %v866
        %868 = vmatmul.bf16.gmra.mxu0 %v338
        %v869 = vpop.f32.mrf.mxu0
        %v870 = vadd.f32 %v821, %v869
        %v871 = vpop.f32.mrf.mxu0
        %v872 = vadd.f32 %v823, %v871
        %873 = vmatmul.bf16.gmra.mxu0 %v342
        %v874 = vpop.f32.mrf.mxu0
        %v875 = vadd.f32 %v826, %v874
        %v876 = vpop.f32.mrf.mxu0
        %v877 = vadd.f32 %v828, %v876
        %878 = vmatmul.bf16.gmra.mxu0 %v346
        %v879 = vpop.f32.mrf.mxu0
        %v880 = vadd.f32 %v831, %v879
        %v881 = vpop.f32.mrf.mxu0
        %v882 = vadd.f32 %v833, %v881
        %883 = vmatmul.bf16.gmra.mxu0 %v350
        %v884 = vpop.f32.mrf.mxu0
        %v885 = vadd.f32 %v836, %v884
        %v886 = vpop.f32.mrf.mxu0
        %v887 = vadd.f32 %v838, %v886
        %888 = vdwg.mxu0
        %889 = vmatpush.bf16.msra.mxu0 %v676
        %890 = vmatpush.bf16.msra.mxu0 %v674
        %891 = vmatpush.bf16.msra.mxu0 %v672
        %892 = vmatpush.bf16.msra.mxu0 %v670
        %893 = vmatpush.bf16.msra.mxu0 %v668
        %894 = vmatpush.bf16.msra.mxu0 %v666
        %895 = vmatpush.bf16.msra.mxu0 %v664
        %896 = vmatpush.bf16.msra.mxu0 %v662
        %897 = vmatmul.bf16.gmra.mxu0 %v323
        %v898 = vpop.f32.mrf.mxu0
        %v899 = vadd.f32 %v850, %v898
        %v900 = vpop.f32.mrf.mxu0
        %v901 = vadd.f32 %v852, %v900
        %902 = vmatmul.bf16.gmra.mxu0 %v327
        %v903 = vpop.f32.mrf.mxu0
        %v904 = vadd.f32 %v855, %v903
        %v905 = vpop.f32.mrf.mxu0
        %v906 = vadd.f32 %v857, %v905
        %907 = vmatmul.bf16.gmra.mxu0 %v331
        %v908 = vpop.f32.mrf.mxu0
        %v909 = vadd.f32 %v860, %v908
        %v910 = vpop.f32.mrf.mxu0
        %v911 = vadd.f32 %v862, %v910
        %912 = vmatmul.bf16.gmra.mxu0 %v335
        %v913 = vpop.f32.mrf.mxu0
        %v914 = vadd.f32 %v865, %v913
        %v915 = vpop.f32.mrf.mxu0
        %v916 = vadd.f32 %v867, %v915
        %917 = vmatmul.bf16.gmra.mxu0 %v339
        %v918 = vpop.f32.mrf.mxu0
        %v919 = vadd.f32 %v870, %v918
        %v920 = vpop.f32.mrf.mxu0
        %v921 = vadd.f32 %v872, %v920
        %922 = vmatmul.bf16.gmra.mxu0 %v343
        %v923 = vpop.f32.mrf.mxu0
        %v924 = vadd.f32 %v875, %v923
        %v925 = vpop.f32.mrf.mxu0
        %v926 = vadd.f32 %v877, %v925
        %927 = vmatmul.bf16.gmra.mxu0 %v347
        %v928 = vpop.f32.mrf.mxu0
        %v929 = vadd.f32 %v880, %v928
        %v930 = vpop.f32.mrf.mxu0
        %v931 = vadd.f32 %v882, %v930
        %932 = vmatmul.bf16.gmra.mxu0 %v351
        %v933 = vpop.f32.mrf.mxu0
        %v934 = vadd.f32 %v885, %v933
        %v935 = vpop.f32.mrf.mxu0
        %v936 = vadd.f32 %v887, %v935
        %937 = vdwg.mxu0
        %938 = vmatpush.bf16.msra.mxu0 %v629
        %939 = vmatpush.bf16.msra.mxu0 %v627
        %940 = vmatpush.bf16.msra.mxu0 %v625
        %941 = vmatpush.bf16.msra.mxu0 %v623
        %942 = vmatpush.bf16.msra.mxu0 %v621
        %943 = vmatpush.bf16.msra.mxu0 %v619
        %944 = vmatpush.bf16.msra.mxu0 %v617
        %945 = vmatpush.bf16.msra.mxu0 %v615
        %946 = vmatmul.bf16.gmra.mxu0 %v320
        %v947 = vpop.f32.mrf.mxu0
        %v948 = vadd.f32 %v419, %v947
        %v949 = vpop.f32.mrf.mxu0
        %v950 = vadd.f32 %v419, %v949
        %951 = vmatmul.bf16.gmra.mxu0 %v324
        %v952 = vpop.f32.mrf.mxu0
        %v953 = vadd.f32 %v419, %v952
        %v954 = vpop.f32.mrf.mxu0
        %v955 = vadd.f32 %v419, %v954
        %956 = vmatmul.bf16.gmra.mxu0 %v328
        %v957 = vpop.f32.mrf.mxu0
        %v958 = vadd.f32 %v419, %v957
        %v959 = vpop.f32.mrf.mxu0
        %v960 = vadd.f32 %v419, %v959
        %961 = vmatmul.bf16.gmra.mxu0 %v332
        %v962 = vpop.f32.mrf.mxu0
        %v963 = vadd.f32 %v419, %v962
        %v964 = vpop.f32.mrf.mxu0
        %v965 = vadd.f32 %v419, %v964
        %966 = vmatmul.bf16.gmra.mxu0 %v336
        %v967 = vpop.f32.mrf.mxu0
        %v968 = vadd.f32 %v419, %v967
        %v969 = vpop.f32.mrf.mxu0
        %v970 = vadd.f32 %v419, %v969
        %971 = vmatmul.bf16.gmra.mxu0 %v340
        %v972 = vpop.f32.mrf.mxu0
        %v973 = vadd.f32 %v419, %v972
        %v974 = vpop.f32.mrf.mxu0
        %v975 = vadd.f32 %v419, %v974
        %976 = vmatmul.bf16.gmra.mxu0 %v344
        %v977 = vpop.f32.mrf.mxu0
        %v978 = vadd.f32 %v419, %v977
        %v979 = vpop.f32.mrf.mxu0
        %v980 = vadd.f32 %v419, %v979
        %981 = vmatmul.bf16.gmra.mxu0 %v348
        %v982 = vpop.f32.mrf.mxu0
        %v983 = vadd.f32 %v419, %v982
        %v984 = vpop.f32.mrf.mxu0
        %v985 = vadd.f32 %v419, %v984
        %986 = vdwg.mxu0
        %987 = vmatpush.bf16.msra.mxu0 %v645
        %988 = vmatpush.bf16.msra.mxu0 %v643
        %989 = vmatpush.bf16.msra.mxu0 %v641
        %990 = vmatpush.bf16.msra.mxu0 %v639
        %991 = vmatpush.bf16.msra.mxu0 %v637
        %992 = vmatpush.bf16.msra.mxu0 %v635
        %993 = vmatpush.bf16.msra.mxu0 %v633
        %994 = vmatpush.bf16.msra.mxu0 %v631
        %995 = vmatmul.bf16.gmra.mxu0 %v321
        %v996 = vpop.f32.mrf.mxu0
        %v997 = vadd.f32 %v948, %v996
        %v998 = vpop.f32.mrf.mxu0
        %v999 = vadd.f32 %v950, %v998
        %1000 = vmatmul.bf16.gmra.mxu0 %v325
        %v1001 = vpop.f32.mrf.mxu0
        %v1002 = vadd.f32 %v953, %v1001
        %v1003 = vpop.f32.mrf.mxu0
        %v1004 = vadd.f32 %v955, %v1003
        %1005 = vmatmul.bf16.gmra.mxu0 %v329
        %v1006 = vpop.f32.mrf.mxu0
        %v1007 = vadd.f32 %v958, %v1006
        %v1008 = vpop.f32.mrf.mxu0
        %v1009 = vadd.f32 %v960, %v1008
        %1010 = vmatmul.bf16.gmra.mxu0 %v333
        %v1011 = vpop.f32.mrf.mxu0
        %v1012 = vadd.f32 %v963, %v1011
        %v1013 = vpop.f32.mrf.mxu0
        %v1014 = vadd.f32 %v965, %v1013
        %1015 = vmatmul.bf16.gmra.mxu0 %v337
        %v1016 = vpop.f32.mrf.mxu0
        %v1017 = vadd.f32 %v968, %v1016
        %v1018 = vpop.f32.mrf.mxu0
        %v1019 = vadd.f32 %v970, %v1018
        %1020 = vmatmul.bf16.gmra.mxu0 %v341
        %v1021 = vpop.f32.mrf.mxu0
        %v1022 = vadd.f32 %v973, %v1021
        %v1023 = vpop.f32.mrf.mxu0
        %v1024 = vadd.f32 %v975, %v1023
        %1025 = vmatmul.bf16.gmra.mxu0 %v345
        %v1026 = vpop.f32.mrf.mxu0
        %v1027 = vadd.f32 %v978, %v1026
        %v1028 = vpop.f32.mrf.mxu0
        %v1029 = vadd.f32 %v980, %v1028
        %1030 = vmatmul.bf16.gmra.mxu0 %v349
        %v1031 = vpop.f32.mrf.mxu0
        %v1032 = vadd.f32 %v983, %v1031
        %v1033 = vpop.f32.mrf.mxu0
        %v1034 = vadd.f32 %v985, %v1033
        %1035 = vdwg.mxu0
        %1036 = vmatpush.bf16.msra.mxu0 %v661
        %1037 = vmatpush.bf16.msra.mxu0 %v659
        %1038 = vmatpush.bf16.msra.mxu0 %v657
        %1039 = vmatpush.bf16.msra.mxu0 %v655
        %1040 = vmatpush.bf16.msra.mxu0 %v653
        %1041 = vmatpush.bf16.msra.mxu0 %v651
        %1042 = vmatpush.bf16.msra.mxu0 %v649
        %1043 = vmatpush.bf16.msra.mxu0 %v647
        %1044 = vmatmul.bf16.gmra.mxu0 %v322
        %v1045 = vpop.f32.mrf.mxu0
        %v1046 = vadd.f32 %v997, %v1045
        %v1047 = vpop.f32.mrf.mxu0
        %v1048 = vadd.f32 %v999, %v1047
        %1049 = vmatmul.bf16.gmra.mxu0 %v326
        %v1050 = vpop.f32.mrf.mxu0
        %v1051 = vadd.f32 %v1002, %v1050
        %v1052 = vpop.f32.mrf.mxu0
        %v1053 = vadd.f32 %v1004, %v1052
        %1054 = vmatmul.bf16.gmra.mxu0 %v330
        %v1055 = vpop.f32.mrf.mxu0
        %v1056 = vadd.f32 %v1007, %v1055
        %v1057 = vpop.f32.mrf.mxu0
        %v1058 = vadd.f32 %v1009, %v1057
        %1059 = vmatmul.bf16.gmra.mxu0 %v334
        %v1060 = vpop.f32.mrf.mxu0
        %v1061 = vadd.f32 %v1012, %v1060
        %v1062 = vpop.f32.mrf.mxu0
        %v1063 = vadd.f32 %v1014, %v1062
        %1064 = vmatmul.bf16.gmra.mxu0 %v338
        %v1065 = vpop.f32.mrf.mxu0
        %v1066 = vadd.f32 %v1017, %v1065
        %v1067 = vpop.f32.mrf.mxu0
        %v1068 = vadd.f32 %v1019, %v1067
        %1069 = vmatmul.bf16.gmra.mxu0 %v342
        %v1070 = vpop.f32.mrf.mxu0
        %v1071 = vadd.f32 %v1022, %v1070
        %v1072 = vpop.f32.mrf.mxu0
        %v1073 = vadd.f32 %v1024, %v1072
        %1074 = vmatmul.bf16.gmra.mxu0 %v346
        %v1075 = vpop.f32.mrf.mxu0
        %v1076 = vadd.f32 %v1027, %v1075
        %v1077 = vpop.f32.mrf.mxu0
        %v1078 = vadd.f32 %v1029, %v1077
        %1079 = vmatmul.bf16.gmra.mxu0 %v350
        %v1080 = vpop.f32.mrf.mxu0
        %v1081 = vadd.f32 %v1032, %v1080
        %v1082 = vpop.f32.mrf.mxu0
        %v1083 = vadd.f32 %v1034, %v1082
        %1084 = vdwg.mxu0
        %1085 = vmatpush.bf16.msra.mxu0 %v677
        %1086 = vmatpush.bf16.msra.mxu0 %v675
        %1087 = vmatpush.bf16.msra.mxu0 %v673
        %1088 = vmatpush.bf16.msra.mxu0 %v671
        %1089 = vmatpush.bf16.msra.mxu0 %v669
        %1090 = vmatpush.bf16.msra.mxu0 %v667
        %1091 = vmatpush.bf16.msra.mxu0 %v665
        %1092 = vmatpush.bf16.msra.mxu0 %v663
        %1093 = vmatmul.bf16.gmra.mxu0 %v323
        %v1094 = vpop.f32.mrf.mxu0
        %v1095 = vadd.f32 %v1046, %v1094
        %v1096 = vpop.f32.mrf.mxu0
        %v1097 = vadd.f32 %v1048, %v1096
        %1098 = vmatmul.bf16.gmra.mxu0 %v327
        %v1099 = vpop.f32.mrf.mxu0
        %v1100 = vadd.f32 %v1051, %v1099
        %v1101 = vpop.f32.mrf.mxu0
        %v1102 = vadd.f32 %v1053, %v1101
        %1103 = vmatmul.bf16.gmra.mxu0 %v331
        %v1104 = vpop.f32.mrf.mxu0
        %v1105 = vadd.f32 %v1056, %v1104
        %v1106 = vpop.f32.mrf.mxu0
        %v1107 = vadd.f32 %v1058, %v1106
        %1108 = vmatmul.bf16.gmra.mxu0 %v335
        %v1109 = vpop.f32.mrf.mxu0
        %v1110 = vadd.f32 %v1061, %v1109
        %v1111 = vpop.f32.mrf.mxu0
        %v1112 = vadd.f32 %v1063, %v1111
        %1113 = vmatmul.bf16.gmra.mxu0 %v339
        %v1114 = vpop.f32.mrf.mxu0
        %v1115 = vadd.f32 %v1066, %v1114
        %v1116 = vpop.f32.mrf.mxu0
        %v1117 = vadd.f32 %v1068, %v1116
        %1118 = vmatmul.bf16.gmra.mxu0 %v343
        %v1119 = vpop.f32.mrf.mxu0
        %v1120 = vadd.f32 %v1071, %v1119
        %v1121 = vpop.f32.mrf.mxu0
        %v1122 = vadd.f32 %v1073, %v1121
        %1123 = vmatmul.bf16.gmra.mxu0 %v347
        %v1124 = vpop.f32.mrf.mxu0
        %v1125 = vadd.f32 %v1076, %v1124
        %v1126 = vpop.f32.mrf.mxu0
        %v1127 = vadd.f32 %v1078, %v1126
        %1128 = vmatmul.bf16.gmra.mxu0 %v351
        %v1129 = vpop.f32.mrf.mxu0
        %v1130 = vadd.f32 %v1081, %v1129
        %v1131 = vpop.f32.mrf.mxu0
        %v1132 = vadd.f32 %v1083, %v1131
        %1133 = vdwg.mxu0
        %v1134 = vmax.f32 %v899, 0.0
        %v1135 = vmax.f32 %v1095, 0.0
        %v1136 = vmax.f32 %v901, 0.0
        %v1137 = vmax.f32 %v1097, 0.0
        %v1138 = vmax.f32 %v904, 0.0
        %v1139 = vmax.f32 %v1100, 0.0
        %v1140 = vmax.f32 %v906, 0.0
        %v1141 = vmax.f32 %v1102, 0.0
        %v1142 = vmax.f32 %v909, 0.0
        %v1143 = vmax.f32 %v1105, 0.0
        %v1144 = vmax.f32 %v911, 0.0
        %v1145 = vmax.f32 %v1107, 0.0
        %v1146 = vmax.f32 %v914, 0.0
        %v1147 = vmax.f32 %v1110, 0.0
        %v1148 = vmax.f32 %v916, 0.0
        %v1149 = vmax.f32 %v1112, 0.0
        %v1150 = vmax.f32 %v919, 0.0
        %v1151 = vmax.f32 %v1115, 0.0
        %v1152 = vmax.f32 %v921, 0.0
        %v1153 = vmax.f32 %v1117, 0.0
        %v1154 = vmax.f32 %v924, 0.0
        %v1155 = vmax.f32 %v1120, 0.0
        %v1156 = vmax.f32 %v926, 0.0
        %v1157 = vmax.f32 %v1122, 0.0
        %v1158 = vmax.f32 %v929, 0.0
        %v1159 = vmax.f32 %v1125, 0.0
        %v1160 = vmax.f32 %v931, 0.0
        %v1161 = vmax.f32 %v1127, 0.0
        %v1162 = vmax.f32 %v934, 0.0
        %v1163 = vmax.f32 %v1130, 0.0
        %v1164 = vmax.f32 %v936, 0.0
        %v1165 = vmax.f32 %v1132, 0.0
        %1166 = vst [vmem:[%s246] sm:$0xff] %v1134
        %1167 = vst [vmem:[%s246 + $0x8] sm:$0xff] %v1135
        %1168 = vst [vmem:[%s246 + $0x10] sm:$0xff] %v1136
        %1169 = vst [vmem:[%s246 + $0x18] sm:$0xff] %v1137
        %1170 = vst [vmem:[%s246 + $0x20] sm:$0xff] %v1138
        %1171 = vst [vmem:[%s246 + $0x28] sm:$0xff] %v1139
        %1172 = vst [vmem:[%s246 + $0x30] sm:$0xff] %v1140
        %1173 = vst [vmem:[%s246 + $0x38] sm:$0xff] %v1141
        %1174 = vst [vmem:[%s246 + $0x40] sm:$0xff] %v1142
        %1175 = vst [vmem:[%s246 + $0x48] sm:$0xff] %v1143
        %1176 = vst [vmem:[%s246 + $0x50] sm:$0xff] %v1144
        %1177 = vst [vmem:[%s246 + $0x58] sm:$0xff] %v1145
        %1178 = vst [vmem:[%s246 + $0x60] sm:$0xff] %v1146
        %1179 = vst [vmem:[%s246 + $0x68] sm:$0xff] %v1147
        %1180 = vst [vmem:[%s246 + $0x70] sm:$0xff] %v1148
        %1181 = vst [vmem:[%s246 + $0x78] sm:$0xff] %v1149
        %1182 = vst [vmem:[%s246 + $0x80] sm:$0xff] %v1150
        %1183 = vst [vmem:[%s246 + $0x88] sm:$0xff] %v1151
        %1184 = vst [vmem:[%s246 + $0x90] sm:$0xff] %v1152
        %1185 = vst [vmem:[%s246 + $0x98] sm:$0xff] %v1153
        %1186 = vst [vmem:[%s246 + $0xa0] sm:$0xff] %v1154
        %1187 = vst [vmem:[%s246 + $0xa8] sm:$0xff] %v1155
        %1188 = vst [vmem:[%s246 + $0xb0] sm:$0xff] %v1156
        %1189 = vst [vmem:[%s246 + $0xb8] sm:$0xff] %v1157
        %1190 = vst [vmem:[%s246 + $0xc0] sm:$0xff] %v1158
        %1191 = vst [vmem:[%s246 + $0xc8] sm:$0xff] %v1159
        %1192 = vst [vmem:[%s246 + $0xd0] sm:$0xff] %v1160
        %1193 = vst [vmem:[%s246 + $0xd8] sm:$0xff] %v1161
        %1194 = vst [vmem:[%s246 + $0xe0] sm:$0xff] %v1162
        %1195 = vst [vmem:[%s246 + $0xe8] sm:$0xff] %v1163
        %1196 = vst [vmem:[%s246 + $0xf0] sm:$0xff] %v1164
        %1197 = vst [vmem:[%s246 + $0xf8] sm:$0xff] %v1165
        %s1198 = sand.u32 %s123, 1
        %s1199 = scalar_lea.sflag [#allocation6], %s1198
        %s1200 = sand.u32 %s123, 1
        %s1201 = smul.addr %s1200, 256
        %s1202 = scalar_lea.vmem [#allocation9], %s1201
        // Predicated region
        $region41: #{tpu_custom_call.1} parent=31 // pred_check
          %p1203 = pneg %p133
        $region42: #{tpu_custom_call.1} parent=31 // pred_check_branch
          %1205 = sbr.rel (%p1203) target = $region44
        $region43: #{tpu_custom_call.1} parent=31 // pred_region
          %s1206 = smul.u32 16, %s27
          %s1207 = smul.u32 2, %s28
          %1209 = vsyncadd %s1199, 0
          %s1210 = smul.addr %s1206, 2
          %s1211 = sadd.s32 %s1207, %s1210
          %s1212 = smul.addr %s1211, 8
          %s1213 = scalar_lea.hbm %s4, %s1212
          %s1214 = sshll.u32 %s1202, 4
          %s1215 = int_to_ptr.vmem [resolvable:$true] %s1214
          %s1216 = sshll.u32 %s1213, 4
          %s1217 = int_to_ptr.hbm [resolvable:$true] %s1216
          %1222 = dma.vmem_to_hbm [thread:$0]  %s1215, 4096, %s1217, %s1199, 256, 256, 16
        $region44: #{tpu_custom_call.1} parent=31 // pred_fallthru
          _
      $region32: #{tpu_custom_call.1} parent=5 // pred_fallthru
        _
      %p1223 = scmp.le.s32.totalorder 2, %s18
      // Predicated region
      $region45: #{tpu_custom_call.1} parent=5 // pred_check
        %p1224 = pneg %p1223
      $region46: #{tpu_custom_call.1} parent=5 // pred_check_branch
        %1226 = sbr.rel (%p1224) target = $region48
      $region47: #{tpu_custom_call.1} parent=5 // pred_region
        %s1227 = ssub.s32 %s18, 2
        // Predicated region
        $region49: #{tpu_custom_call.1} parent=47 // pred_check
          %p1228 = pneg %p139
        $region50: #{tpu_custom_call.1} parent=47 // pred_check_branch
          %1230 = sbr.rel (%p1228) target = $region52
        $region51: #{tpu_custom_call.1} parent=47 // pred_region
          %s1231 = sand.u32 %s124, 1
          %s1232 = scalar_lea.sflag [#allocation6], %s1231
          %s1233 = sand.u32 %s124, 1
          %s1234 = smul.addr %s1233, 256
          %s1235 = scalar_lea.vmem [#allocation9], %s1234
          %1237 = dma.done %s1232, 4096
        $region52: #{tpu_custom_call.1} parent=47 // pred_fallthru
          _
      $region48: #{tpu_custom_call.1} parent=5 // pred_fallthru
        _
    $region6: #{tpu_custom_call.1} parent=1 // loop_footer
      %s22 = sadd.s32 1, %s18
    $region7: #{tpu_custom_call.1} parent=1 // loop_footer_branch
      %17 = sbr.rel target = $region3
    $region8: #{tpu_custom_call.1} parent=1 // loop_exit
      _
    %1238 = vsyncpa [#allocation5], 1
    %s1239 = scalar_lea.sflag [#allocation5], 1
    %1240 = vsyncpa %s1239, 1
    %1241 = vsyncpa [#allocation8], 1
    %1242 = vsyncpa [#allocation6], 1
    %s1243 = scalar_lea.sflag [#allocation6], 1
    %1244 = vsyncpa %s1243, 1

</llo_original>
